<compile_context>
chip_gen: v5e
topology: v5e:2x2
jax: 0.10.0
libtpu: 0.0.40
codegen_flags: <defaults>
</compile_context>

<pallas_src>
import numpy as np
import jax
import jax.numpy as jnp
from jax.experimental import pallas as pl
from jax.experimental.pallas import tpu as pltpu  # noqa: F401  (kept for TPU-specific tuning hooks)


def _round_up(x, m):
    return ((x + m - 1) // m) * m


# ------------------------------ Fused kernel ---------------------------------

def _make_fused_kernel(layout, dims):
    """Fused: combined stacked-RNN (block-diag sentiment (+) price) -> fc1(+BN) -> relu
    -> fc2(+BN) -> relu -> fc3.  BN is already folded into fc1/fc2."""
    H2 = 2 * dims["H"]            # combined hidden width  [sentiment | price]
    L = dims["L"]
    D = dims["Ds"] + dims["Dp"]   # combined input feature width

    def kernel(x_ref, prm_ref, out_ref):
        def carve(name):
            r0, c0, r, c = layout[name]       # static python ints -> free static slices
            return prm_ref[r0:r0 + r, c0:c0 + c]

        x = x_ref[...]                        # (B, T, Ds+Dp)
        T = x.shape[1]

        # ---- layer-1 input projection for all T steps, hoisted off the recurrence ----
        wih1 = carve("wih1")                  # (Ds+Dp, 2H), block-diagonal
        b1 = carve("b1")                      # (1, 2H)
        pre1 = x[:, :, 0:1] * wih1[0:1].reshape(1, 1, H2)
        for d in range(1, D):
            pre1 = pre1 + x[:, :, d:d + 1] * wih1[d:d + 1].reshape(1, 1, H2)
        pre1 = pre1 + b1.reshape(1, 1, H2)    # (B, T, 2H)

        # ---- combined stacked recurrence (block-diagonal), per-step wavefront ----
        whh1 = carve("whh1")                  # (2H, 2H)
        deeper = [(carve(f"wih{l}"), carve(f"whh{l}"), carve(f"b{l}"))
                  for l in range(2, L + 1)]

        hs = [None] * L                       # only L hidden states live (wavefront)
        for t in range(T):                    # T tiny & static -> Python-unrolled
            z = pre1[:, t, :]                 # (B, 2H)
            if hs[0] is not None:             # h_0 == 0 -> skip recurrent matmul at t == 0
                z = z + jnp.dot(hs[0], whh1, preferred_element_type=jnp.float32)
            hs[0] = jnp.tanh(z)
            for li, (wih, whh, b) in enumerate(deeper, start=1):
                z = jnp.dot(hs[li - 1], wih, preferred_element_type=jnp.float32) + b
                if hs[li] is not None:
                    z = z + jnp.dot(hs[li], whh, preferred_element_type=jnp.float32)
                hs[li] = jnp.tanh(z)
        # TODO(synk): a bf16 recurrent matmul would roughly halve per-step MXU latency but
        #             needs the 1e-4 tolerance re-validated; kept in f32 here.

        h_last = hs[L - 1]                    # (B, 2H) == [sentiment_last | price_last]

        # ---- MLP head (BatchNorm folded into fc1/fc2 on the host) ----
        y = jnp.dot(h_last, carve("w1fc"), preferred_element_type=jnp.float32) + carve("b1fc")
        # TODO(synk): F.dropout(p=0.2) is stochastic; identity here (inference semantics).
        y = jnp.maximum(y, 0.0)
        y = jnp.dot(y, carve("w2fc"), preferred_element_type=jnp.float32) + carve("b2fc")
        y = jnp.maximum(y, 0.0)
        out_ref[...] = (jnp.dot(y, carve("w3fc"), preferred_element_type=jnp.float32)
                        + carve("b3fc"))

    return kernel


def forward(prepared, sentiment_seq, price_seq):
    """Single fused pallas_call.  The feature-wise concat below is layout plumbing only; all
    compute (projections, recurrence, head) runs inside the kernel."""
    if sentiment_seq.ndim == 2:               # sentiment feature dim == 1 (torch unsqueeze)
        sentiment_seq = sentiment_seq[..., None]
    seq = jnp.concatenate([sentiment_seq.astype(jnp.float32),
                           price_seq.astype(jnp.float32)], axis=-1)   # (B, T, Ds+Dp)
    dims = prepared["dims"]
    assert seq.shape[-1] == dims["Ds"] + dims["Dp"]
    B = seq.shape[0]
    kernel = _make_fused_kernel(prepared["layout"], dims)
    return pl.pallas_call(
        kernel,
        out_shape=jax.ShapeDtypeStruct((B, 1), jnp.float32),
    )(seq, prepared["packed"])


# ------------------------------ Parameter init -------------------------------

def init_rnn_params(key, in_dim, hidden, num_layers):
    """PyTorch-style uniform(-1/sqrt(H), 1/sqrt(H)) init; weights stored transposed (x @ W)."""
    k = 1.0 / np.sqrt(hidden)
    layers = []
    d = in_dim
    for _ in range(num_layers):
        key, k1, k2, k3, k4 = jax.random.split(key, 5)
        wih = jax.random.uniform(k1, (d, hidden), jnp.float32, -k, k)
        whh = jax.random.uniform(k2, (hidden, hidden), jnp.float32, -k, k)
        bih = jax.random.uniform(k3, (1, hidden), jnp.float32, -k, k)
        bhh = jax.random.uniform(k4, (1, hidden), jnp.float32, -k, k)
        layers.append((wih, whh, bih + bhh))
        d = hidden
    return layers, key


def init_linear(key, in_dim, out_dim):
    key, k1, k2 = jax.random.split(key, 3)
    bound = 1.0 / np.sqrt(in_dim)
    w = jax.random.uniform(k1, (in_dim, out_dim), jnp.float32, -bound, bound)
    b = jax.random.uniform(k2, (1, out_dim), jnp.float32, -bound, bound)
    return w, b, key


def init_params(key, input_size, hidden, num_layers, fc_size):
    rnn_sent, key = init_rnn_params(key, input_size[0], hidden, num_layers)
    rnn_price, key = init_rnn_params(key, input_size[1], hidden, num_layers)
    w1, b1, key = init_linear(key, hidden * 2, fc_size)
    w2, b2, key = init_linear(key, fc_size, fc_size)
    w3, b3, key = init_linear(key, fc_size, 1)
    head = {
        "w1": w1, "b1": b1,
        "g1": jnp.ones((1, fc_size), jnp.float32),
        "beta1": jnp.zeros((1, fc_size), jnp.float32),
        "m1": jnp.zeros((1, fc_size), jnp.float32),
        "v1": jnp.ones((1, fc_size), jnp.float32),
        "w2": w2, "b2": b2,
        "g2": jnp.ones((1, fc_size), jnp.float32),
        "beta2": jnp.zeros((1, fc_size), jnp.float32),
        "m2": jnp.zeros((1, fc_size), jnp.float32),
        "v2": jnp.ones((1, fc_size), jnp.float32),
        "w3": w3, "b3": b3,
    }
    return {"rnn_sentiment": rnn_sent, "rnn_price": rnn_price, "head": head}


# -------------------------- Host-side parameter prep --------------------------

def _fold_bn_into_linear(w, b, g, beta, m, v, eps=1e-5):
    """Linear -> BatchNorm(eval) folded into a single affine (host-side numpy)."""
    w = np.asarray(w, np.float32)
    b = np.asarray(b, np.float32)
    scale = np.asarray(g, np.float32) / np.sqrt(np.asarray(v, np.float32) + eps)
    wf = (w * scale).astype(np.float32)
    bf = ((b - np.asarray(m, np.float32)) * scale + np.asarray(beta, np.float32)).astype(np.float32)
    return wf, bf


def _block_diag(a, b):
    a = np.asarray(a, np.float32)
    b = np.asarray(b, np.float32)
    out = np.zeros((a.shape[0] + b.shape[0], a.shape[1] + b.shape[1]), np.float32)
    out[:a.shape[0], :a.shape[1]] = a
    out[a.shape[0]:, a.shape[1]:] = b
    return out


def prepare_params(params):
    """One-time host prep: fold BN into fc1/fc2, fuse the two stacks into block-diagonal
    combined weights, and pack EVERY operand into one (R, 128) f32 buffer + a static layout
    map (8-sublane-aligned row offsets, two 64-lane columns) -> one parameter DMA."""
    sent = params["rnn_sentiment"]
    price = params["rnn_price"]
    hp = params["head"]
    L = len(sent)
    assert len(price) == L
    H = int(np.asarray(sent[0][1]).shape[0])
    Ds = int(np.asarray(sent[0][0]).shape[0])
    Dp = int(np.asarray(price[0][0]).shape[0])

    w1f, b1f = _fold_bn_into_linear(hp["w1"], hp["b1"], hp["g1"], hp["beta1"], hp["m1"], hp["v1"])
    w2f, b2f = _fold_bn_into_linear(hp["w2"], hp["b2"], hp["g2"], hp["beta2"], hp["m2"], hp["v2"])

    def cat_bias(l):
        return np.concatenate([np.asarray(sent[l][2], np.float32),
                               np.asarray(price[l][2], np.float32)], axis=1)

    chunks = [("wih1", _block_diag(sent[0][0], price[0][0])),     # (Ds+Dp, 2H)
              ("whh1", _block_diag(sent[0][1], price[0][1])),     # (2H, 2H)
              ("b1", cat_bias(0))]
    for l in range(1, L):
        chunks += [(f"wih{l + 1}", _block_diag(sent[l][0], price[l][0])),
                   (f"whh{l + 1}", _block_diag(sent[l][1], price[l][1])),
                   (f"b{l + 1}", cat_bias(l))]
    chunks += [("w1fc", w1f), ("b1fc", b1f),
               ("w2fc", w2f), ("b2fc", b2f),
               ("w3fc", np.asarray(hp["w3"], np.float32)),
               ("b3fc", np.asarray(hp["b3"], np.float32))]

    # Greedy 2-column shelf packing: lanes [0:64) / [64:128), 8-aligned row starts.
    layout = {}
    col_next = [0, 0]
    wide = []
    for name, arr in chunks:
        r, c = arr.shape
        assert c <= 128, f"chunk {name} wider than 128 lanes"
        if c <= 64:
            col = 0 if col_next[0] <= col_next[1] else 1
            layout[name] = (col_next[col], 64 * col, r, c)
            col_next[col] = _round_up(col_next[col] + r, 8)
        else:
            wide.append((name, r, c))
    for name, r, c in wide:
        r0 = max(col_next)
        layout[name] = (r0, 0, r, c)
        col_next = [_round_up(r0 + r, 8)] * 2
    rows = max(_round_up(max(col_next), 8), 8)

    buf = np.zeros((rows, 128), np.float32)
    for name, arr in chunks:
        r0, c0, r, c = layout[name]
        buf[r0:r0 + r, c0:c0 + c] = arr

    return {"packed": jnp.asarray(buf),
            "layout": layout,
            "dims": {"H": H, "L": L, "Ds": Ds, "Dp": Dp}}


# ------------------------------ Pure-JAX reference ---------------------------

def _ref_forward(params, sentiment_seq, price_seq):
    if sentiment_seq.ndim == 2:
        sentiment_seq = sentiment_seq[..., None]

    def run_rnn(seq, layers):
        x = seq
        for (wih, whh, b) in layers:
            B, T, _ = x.shape
            H = wih.shape[1]
            h = jnp.zeros((B, H), jnp.float32)
            outs = []
            for t in range(T):
                h = jnp.tanh(x[:, t, :] @ wih + h @ whh + b)
                outs.append(h)
            x = jnp.stack(outs, axis=1)
        return x

    s = run_rnn(sentiment_seq, params["rnn_sentiment"])[:, -1, :]
    p = run_rnn(price_seq, params["rnn_price"])[:, -1, :]
    x = jnp.concatenate([s, p], axis=1)
    hp = params["head"]
    eps = 1e-5
    x = x @ hp["w1"] + hp["b1"]
    x = (x - hp["m1"]) / jnp.sqrt(hp["v1"] + eps) * hp["g1"] + hp["beta1"]
    x = jnp.maximum(x, 0.0)
    x = x @ hp["w2"] + hp["b2"]
    x = (x - hp["m2"]) / jnp.sqrt(hp["v2"] + eps) * hp["g2"] + hp["beta2"]
    x = jnp.maximum(x, 0.0)
    return x @ hp["w3"] + hp["b3"]


# ----------------------------------- Main -------------------------------------

if __name__ == "__main__":
    # cfg: hidden_size=32, hidden_layers=2, dropout=0.0, fc_size=64
    # input_size = (sentiment_dim, price_dim) = (1, 4)
    B, T = 4, 8
    HIDDEN, LAYERS, FC = 32, 2, 64
    INPUT_SIZE = (1, 4)

    key = jax.random.PRNGKey(0)
    key, kp, ks, kd = jax.random.split(key, 4)
    params = init_params(kp, INPUT_SIZE, HIDDEN, LAYERS, FC)

    # Non-trivial BN running stats so the BN-folding path is actually exercised by the check.
    for i in (1, 2):
        key, k1, k2, k3, k4 = jax.random.split(key, 5)
        params["head"][f"g{i}"] = jax.random.uniform(k1, (1, FC), jnp.float32, 0.5, 1.5)
        params["head"][f"beta{i}"] = 0.1 * jax.random.normal(k2, (1, FC), jnp.float32)
        params["head"][f"m{i}"] = 0.2 * jax.random.normal(k3, (1, FC), jnp.float32)
        params["head"][f"v{i}"] = jax.random.uniform(k4, (1, FC), jnp.float32, 0.5, 2.0)

    # sentiment_seq has feature dim 1 -> provided as (B, T), exactly like the PyTorch module.
    sentiment_seq = jax.random.normal(ks, (B, T), jnp.float32)
    price_seq = jax.random.normal(kd, (B, T, INPUT_SIZE[1]), jnp.float32)

    prepared = prepare_params(params)
    out = forward(prepared, sentiment_seq, price_seq)
    out = jax.block_until_ready(out)

    ref = _ref_forward(params, sentiment_seq, price_seq)
    assert out.shape == (B, 1), out.shape
    np.testing.assert_allclose(np.asarray(out), np.asarray(ref),
                               rtol=1e-4, atol=1e-4)
    print("KERNEL_OK")
</pallas_src>

<mosaic_0001>
module attributes {stable_mosaic.version = 11 : i64} {
  func.func @kernel(%arg0: memref<4x8x5xf32, #tpu.memory_space<vmem>>, %arg1: memref<224x128xf32, #tpu.memory_space<vmem>>, %arg2: memref<4x1xf32, #tpu.memory_space<vmem>>) attributes {dimension_semantics = [], scalar_prefetch = 0 : i64, scratch_operands = 0 : i64, tpu.core_type = #tpu.core_type<tc>} {
    %c0 = arith.constant 0 : index
    %c0_0 = arith.constant 0 : index
    %c0_1 = arith.constant 0 : index
    %0 = vector.load %arg0[%c0, %c0_0, %c0_1] : memref<4x8x5xf32, #tpu.memory_space<vmem>>, vector<4x8x5xf32>
    %c0_2 = arith.constant 0 : index
    %c0_3 = arith.constant 0 : index
    %1 = vector.load %arg1[%c0_2, %c0_3] : memref<224x128xf32, #tpu.memory_space<vmem>>, vector<5x64xf32>
    %c8 = arith.constant 8 : index
    %c0_4 = arith.constant 0 : index
    %2 = vector.load %arg1[%c8, %c0_4] : memref<224x128xf32, #tpu.memory_space<vmem>>, vector<1x64xf32>
    %3 = vector.extract_strided_slice %0 {offsets = [0, 0, 0], sizes = [4, 8, 1], strides = [1, 1, 1]} : vector<4x8x5xf32> to vector<4x8x1xf32>
    %4 = vector.extract_strided_slice %1 {offsets = [0, 0], sizes = [1, 64], strides = [1, 1]} : vector<5x64xf32> to vector<1x64xf32>
    %5 = vector.shape_cast %4 : vector<1x64xf32> to vector<1x1x64xf32>
    %6 = vector.broadcast %3 : vector<4x8x1xf32> to vector<4x8x64xf32>
    %7 = vector.broadcast %5 : vector<1x1x64xf32> to vector<4x8x64xf32>
    %8 = arith.mulf %6, %7 : vector<4x8x64xf32>
    %9 = vector.extract_strided_slice %0 {offsets = [0, 0, 1], sizes = [4, 8, 1], strides = [1, 1, 1]} : vector<4x8x5xf32> to vector<4x8x1xf32>
    %10 = vector.extract_strided_slice %1 {offsets = [1, 0], sizes = [1, 64], strides = [1, 1]} : vector<5x64xf32> to vector<1x64xf32>
    %11 = vector.shape_cast %10 : vector<1x64xf32> to vector<1x1x64xf32>
    %12 = vector.broadcast %9 : vector<4x8x1xf32> to vector<4x8x64xf32>
    %13 = vector.broadcast %11 : vector<1x1x64xf32> to vector<4x8x64xf32>
    %14 = arith.mulf %12, %13 : vector<4x8x64xf32>
    %15 = arith.addf %8, %14 : vector<4x8x64xf32>
    %16 = vector.extract_strided_slice %0 {offsets = [0, 0, 2], sizes = [4, 8, 1], strides = [1, 1, 1]} : vector<4x8x5xf32> to vector<4x8x1xf32>
    %17 = vector.extract_strided_slice %1 {offsets = [2, 0], sizes = [1, 64], strides = [1, 1]} : vector<5x64xf32> to vector<1x64xf32>
    %18 = vector.shape_cast %17 : vector<1x64xf32> to vector<1x1x64xf32>
    %19 = vector.broadcast %16 : vector<4x8x1xf32> to vector<4x8x64xf32>
    %20 = vector.broadcast %18 : vector<1x1x64xf32> to vector<4x8x64xf32>
    %21 = arith.mulf %19, %20 : vector<4x8x64xf32>
    %22 = arith.addf %15, %21 : vector<4x8x64xf32>
    %23 = vector.extract_strided_slice %0 {offsets = [0, 0, 3], sizes = [4, 8, 1], strides = [1, 1, 1]} : vector<4x8x5xf32> to vector<4x8x1xf32>
    %24 = vector.extract_strided_slice %1 {offsets = [3, 0], sizes = [1, 64], strides = [1, 1]} : vector<5x64xf32> to vector<1x64xf32>
    %25 = vector.shape_cast %24 : vector<1x64xf32> to vector<1x1x64xf32>
    %26 = vector.broadcast %23 : vector<4x8x1xf32> to vector<4x8x64xf32>
    %27 = vector.broadcast %25 : vector<1x1x64xf32> to vector<4x8x64xf32>
    %28 = arith.mulf %26, %27 : vector<4x8x64xf32>
    %29 = arith.addf %22, %28 : vector<4x8x64xf32>
    %30 = vector.extract_strided_slice %0 {offsets = [0, 0, 4], sizes = [4, 8, 1], strides = [1, 1, 1]} : vector<4x8x5xf32> to vector<4x8x1xf32>
    %31 = vector.extract_strided_slice %1 {offsets = [4, 0], sizes = [1, 64], strides = [1, 1]} : vector<5x64xf32> to vector<1x64xf32>
    %32 = vector.shape_cast %31 : vector<1x64xf32> to vector<1x1x64xf32>
    %33 = vector.broadcast %30 : vector<4x8x1xf32> to vector<4x8x64xf32>
    %34 = vector.broadcast %32 : vector<1x1x64xf32> to vector<4x8x64xf32>
    %35 = arith.mulf %33, %34 : vector<4x8x64xf32>
    %36 = arith.addf %29, %35 : vector<4x8x64xf32>
    %37 = vector.shape_cast %2 : vector<1x64xf32> to vector<1x1x64xf32>
    %38 = vector.broadcast %37 : vector<1x1x64xf32> to vector<4x8x64xf32>
    %39 = arith.addf %36, %38 : vector<4x8x64xf32>
    %c0_5 = arith.constant 0 : index
    %c64 = arith.constant 64 : index
    %40 = vector.load %arg1[%c0_5, %c64] : memref<224x128xf32, #tpu.memory_space<vmem>>, vector<64x64xf32>
    %c16 = arith.constant 16 : index
    %c0_6 = arith.constant 0 : index
    %41 = vector.load %arg1[%c16, %c0_6] : memref<224x128xf32, #tpu.memory_space<vmem>>, vector<64x64xf32>
    %c64_7 = arith.constant 64 : index
    %c64_8 = arith.constant 64 : index
    %42 = vector.load %arg1[%c64_7, %c64_8] : memref<224x128xf32, #tpu.memory_space<vmem>>, vector<64x64xf32>
    %c80 = arith.constant 80 : index
    %c0_9 = arith.constant 0 : index
    %43 = vector.load %arg1[%c80, %c0_9] : memref<224x128xf32, #tpu.memory_space<vmem>>, vector<1x64xf32>
    %44 = vector.extract_strided_slice %39 {offsets = [0, 0, 0], sizes = [4, 1, 64], strides = [1, 1, 1]} : vector<4x8x64xf32> to vector<4x1x64xf32>
    %45 = vector.shape_cast %44 : vector<4x1x64xf32> to vector<4x64xf32>
    %46 = math.tanh %45 : vector<4x64xf32>
    %cst = arith.constant dense<0.000000e+00> : vector<4x64xf32>
    %47 = tpu.matmul %46, %41, %cst {dimension_numbers = #tpu.dot_dimension_numbers<[1], [0], [0], [1], [0, 0, 1, 1], [], []>} : vector<4x64xf32>, vector<64x64xf32>, vector<4x64xf32> -> vector<4x64xf32>
    %48 = vector.broadcast %43 : vector<1x64xf32> to vector<4x64xf32>
    %49 = arith.addf %47, %48 : vector<4x64xf32>
    %50 = math.tanh %49 : vector<4x64xf32>
    %51 = vector.extract_strided_slice %39 {offsets = [0, 1, 0], sizes = [4, 1, 64], strides = [1, 1, 1]} : vector<4x8x64xf32> to vector<4x1x64xf32>
    %52 = vector.shape_cast %51 : vector<4x1x64xf32> to vector<4x64xf32>
    %cst_10 = arith.constant dense<0.000000e+00> : vector<4x64xf32>
    %53 = tpu.matmul %46, %40, %cst_10 {dimension_numbers = #tpu.dot_dimension_numbers<[1], [0], [0], [1], [0, 0, 1, 1], [], []>} : vector<4x64xf32>, vector<64x64xf32>, vector<4x64xf32> -> vector<4x64xf32>
    %54 = arith.addf %52, %53 : vector<4x64xf32>
    %55 = math.tanh %54 : vector<4x64xf32>
    %cst_11 = arith.constant dense<0.000000e+00> : vector<4x64xf32>
    %56 = tpu.matmul %55, %41, %cst_11 {dimension_numbers = #tpu.dot_dimension_numbers<[1], [0], [0], [1], [0, 0, 1, 1], [], []>} : vector<4x64xf32>, vector<64x64xf32>, vector<4x64xf32> -> vector<4x64xf32>
    %57 = vector.broadcast %43 : vector<1x64xf32> to vector<4x64xf32>
    %58 = arith.addf %56, %57 : vector<4x64xf32>
    %cst_12 = arith.constant dense<0.000000e+00> : vector<4x64xf32>
    %59 = tpu.matmul %50, %42, %cst_12 {dimension_numbers = #tpu.dot_dimension_numbers<[1], [0], [0], [1], [0, 0, 1, 1], [], []>} : vector<4x64xf32>, vector<64x64xf32>, vector<4x64xf32> -> vector<4x64xf32>
    %60 = arith.addf %58, %59 : vector<4x64xf32>
    %61 = math.tanh %60 : vector<4x64xf32>
    %62 = vector.extract_strided_slice %39 {offsets = [0, 2, 0], sizes = [4, 1, 64], strides = [1, 1, 1]} : vector<4x8x64xf32> to vector<4x1x64xf32>
    %63 = vector.shape_cast %62 : vector<4x1x64xf32> to vector<4x64xf32>
    %cst_13 = arith.constant dense<0.000000e+00> : vector<4x64xf32>
    %64 = tpu.matmul %55, %40, %cst_13 {dimension_numbers = #tpu.dot_dimension_numbers<[1], [0], [0], [1], [0, 0, 1, 1], [], []>} : vector<4x64xf32>, vector<64x64xf32>, vector<4x64xf32> -> vector<4x64xf32>
    %65 = arith.addf %63, %64 : vector<4x64xf32>
    %66 = math.tanh %65 : vector<4x64xf32>
    %cst_14 = arith.constant dense<0.000000e+00> : vector<4x64xf32>
    %67 = tpu.matmul %66, %41, %cst_14 {dimension_numbers = #tpu.dot_dimension_numbers<[1], [0], [0], [1], [0, 0, 1, 1], [], []>} : vector<4x64xf32>, vector<64x64xf32>, vector<4x64xf32> -> vector<4x64xf32>
    %68 = vector.broadcast %43 : vector<1x64xf32> to vector<4x64xf32>
    %69 = arith.addf %67, %68 : vector<4x64xf32>
    %cst_15 = arith.constant dense<0.000000e+00> : vector<4x64xf32>
    %70 = tpu.matmul %61, %42, %cst_15 {dimension_numbers = #tpu.dot_dimension_numbers<[1], [0], [0], [1], [0, 0, 1, 1], [], []>} : vector<4x64xf32>, vector<64x64xf32>, vector<4x64xf32> -> vector<4x64xf32>
    %71 = arith.addf %69, %70 : vector<4x64xf32>
    %72 = math.tanh %71 : vector<4x64xf32>
    %73 = vector.extract_strided_slice %39 {offsets = [0, 3, 0], sizes = [4, 1, 64], strides = [1, 1, 1]} : vector<4x8x64xf32> to vector<4x1x64xf32>
    %74 = vector.shape_cast %73 : vector<4x1x64xf32> to vector<4x64xf32>
    %cst_16 = arith.constant dense<0.000000e+00> : vector<4x64xf32>
    %75 = tpu.matmul %66, %40, %cst_16 {dimension_numbers = #tpu.dot_dimension_numbers<[1], [0], [0], [1], [0, 0, 1, 1], [], []>} : vector<4x64xf32>, vector<64x64xf32>, vector<4x64xf32> -> vector<4x64xf32>
    %76 = arith.addf %74, %75 : vector<4x64xf32>
    %77 = math.tanh %76 : vector<4x64xf32>
    %cst_17 = arith.constant dense<0.000000e+00> : vector<4x64xf32>
    %78 = tpu.matmul %77, %41, %cst_17 {dimension_numbers = #tpu.dot_dimension_numbers<[1], [0], [0], [1], [0, 0, 1, 1], [], []>} : vector<4x64xf32>, vector<64x64xf32>, vector<4x64xf32> -> vector<4x64xf32>
    %79 = vector.broadcast %43 : vector<1x64xf32> to vector<4x64xf32>
    %80 = arith.addf %78, %79 : vector<4x64xf32>
    %cst_18 = arith.constant dense<0.000000e+00> : vector<4x64xf32>
    %81 = tpu.matmul %72, %42, %cst_18 {dimension_numbers = #tpu.dot_dimension_numbers<[1], [0], [0], [1], [0, 0, 1, 1], [], []>} : vector<4x64xf32>, vector<64x64xf32>, vector<4x64xf32> -> vector<4x64xf32>
    %82 = arith.addf %80, %81 : vector<4x64xf32>
    %83 = math.tanh %82 : vector<4x64xf32>
    %84 = vector.extract_strided_slice %39 {offsets = [0, 4, 0], sizes = [4, 1, 64], strides = [1, 1, 1]} : vector<4x8x64xf32> to vector<4x1x64xf32>
    %85 = vector.shape_cast %84 : vector<4x1x64xf32> to vector<4x64xf32>
    %cst_19 = arith.constant dense<0.000000e+00> : vector<4x64xf32>
    %86 = tpu.matmul %77, %40, %cst_19 {dimension_numbers = #tpu.dot_dimension_numbers<[1], [0], [0], [1], [0, 0, 1, 1], [], []>} : vector<4x64xf32>, vector<64x64xf32>, vector<4x64xf32> -> vector<4x64xf32>
    %87 = arith.addf %85, %86 : vector<4x64xf32>
    %88 = math.tanh %87 : vector<4x64xf32>
    %cst_20 = arith.constant dense<0.000000e+00> : vector<4x64xf32>
    %89 = tpu.matmul %88, %41, %cst_20 {dimension_numbers = #tpu.dot_dimension_numbers<[1], [0], [0], [1], [0, 0, 1, 1], [], []>} : vector<4x64xf32>, vector<64x64xf32>, vector<4x64xf32> -> vector<4x64xf32>
    %90 = vector.broadcast %43 : vector<1x64xf32> to vector<4x64xf32>
    %91 = arith.addf %89, %90 : vector<4x64xf32>
    %cst_21 = arith.constant dense<0.000000e+00> : vector<4x64xf32>
    %92 = tpu.matmul %83, %42, %cst_21 {dimension_numbers = #tpu.dot_dimension_numbers<[1], [0], [0], [1], [0, 0, 1, 1], [], []>} : vector<4x64xf32>, vector<64x64xf32>, vector<4x64xf32> -> vector<4x64xf32>
    %93 = arith.addf %91, %92 : vector<4x64xf32>
    %94 = math.tanh %93 : vector<4x64xf32>
    %95 = vector.extract_strided_slice %39 {offsets = [0, 5, 0], sizes = [4, 1, 64], strides = [1, 1, 1]} : vector<4x8x64xf32> to vector<4x1x64xf32>
    %96 = vector.shape_cast %95 : vector<4x1x64xf32> to vector<4x64xf32>
    %cst_22 = arith.constant dense<0.000000e+00> : vector<4x64xf32>
    %97 = tpu.matmul %88, %40, %cst_22 {dimension_numbers = #tpu.dot_dimension_numbers<[1], [0], [0], [1], [0, 0, 1, 1], [], []>} : vector<4x64xf32>, vector<64x64xf32>, vector<4x64xf32> -> vector<4x64xf32>
    %98 = arith.addf %96, %97 : vector<4x64xf32>
    %99 = math.tanh %98 : vector<4x64xf32>
    %cst_23 = arith.constant dense<0.000000e+00> : vector<4x64xf32>
    %100 = tpu.matmul %99, %41, %cst_23 {dimension_numbers = #tpu.dot_dimension_numbers<[1], [0], [0], [1], [0, 0, 1, 1], [], []>} : vector<4x64xf32>, vector<64x64xf32>, vector<4x64xf32> -> vector<4x64xf32>
    %101 = vector.broadcast %43 : vector<1x64xf32> to vector<4x64xf32>
    %102 = arith.addf %100, %101 : vector<4x64xf32>
    %cst_24 = arith.constant dense<0.000000e+00> : vector<4x64xf32>
    %103 = tpu.matmul %94, %42, %cst_24 {dimension_numbers = #tpu.dot_dimension_numbers<[1], [0], [0], [1], [0, 0, 1, 1], [], []>} : vector<4x64xf32>, vector<64x64xf32>, vector<4x64xf32> -> vector<4x64xf32>
    %104 = arith.addf %102, %103 : vector<4x64xf32>
    %105 = math.tanh %104 : vector<4x64xf32>
    %106 = vector.extract_strided_slice %39 {offsets = [0, 6, 0], sizes = [4, 1, 64], strides = [1, 1, 1]} : vector<4x8x64xf32> to vector<4x1x64xf32>
    %107 = vector.shape_cast %106 : vector<4x1x64xf32> to vector<4x64xf32>
    %cst_25 = arith.constant dense<0.000000e+00> : vector<4x64xf32>
    %108 = tpu.matmul %99, %40, %cst_25 {dimension_numbers = #tpu.dot_dimension_numbers<[1], [0], [0], [1], [0, 0, 1, 1], [], []>} : vector<4x64xf32>, vector<64x64xf32>, vector<4x64xf32> -> vector<4x64xf32>
    %109 = arith.addf %107, %108 : vector<4x64xf32>
    %110 = math.tanh %109 : vector<4x64xf32>
    %cst_26 = arith.constant dense<0.000000e+00> : vector<4x64xf32>
    %111 = tpu.matmul %110, %41, %cst_26 {dimension_numbers = #tpu.dot_dimension_numbers<[1], [0], [0], [1], [0, 0, 1, 1], [], []>} : vector<4x64xf32>, vector<64x64xf32>, vector<4x64xf32> -> vector<4x64xf32>
    %112 = vector.broadcast %43 : vector<1x64xf32> to vector<4x64xf32>
    %113 = arith.addf %111, %112 : vector<4x64xf32>
    %cst_27 = arith.constant dense<0.000000e+00> : vector<4x64xf32>
    %114 = tpu.matmul %105, %42, %cst_27 {dimension_numbers = #tpu.dot_dimension_numbers<[1], [0], [0], [1], [0, 0, 1, 1], [], []>} : vector<4x64xf32>, vector<64x64xf32>, vector<4x64xf32> -> vector<4x64xf32>
    %115 = arith.addf %113, %114 : vector<4x64xf32>
    %116 = math.tanh %115 : vector<4x64xf32>
    %117 = vector.extract_strided_slice %39 {offsets = [0, 7, 0], sizes = [4, 1, 64], strides = [1, 1, 1]} : vector<4x8x64xf32> to vector<4x1x64xf32>
    %118 = vector.shape_cast %117 : vector<4x1x64xf32> to vector<4x64xf32>
    %cst_28 = arith.constant dense<0.000000e+00> : vector<4x64xf32>
    %119 = tpu.matmul %110, %40, %cst_28 {dimension_numbers = #tpu.dot_dimension_numbers<[1], [0], [0], [1], [0, 0, 1, 1], [], []>} : vector<4x64xf32>, vector<64x64xf32>, vector<4x64xf32> -> vector<4x64xf32>
    %120 = arith.addf %118, %119 : vector<4x64xf32>
    %121 = math.tanh %120 : vector<4x64xf32>
    %cst_29 = arith.constant dense<0.000000e+00> : vector<4x64xf32>
    %122 = tpu.matmul %121, %41, %cst_29 {dimension_numbers = #tpu.dot_dimension_numbers<[1], [0], [0], [1], [0, 0, 1, 1], [], []>} : vector<4x64xf32>, vector<64x64xf32>, vector<4x64xf32> -> vector<4x64xf32>
    %123 = vector.broadcast %43 : vector<1x64xf32> to vector<4x64xf32>
    %124 = arith.addf %122, %123 : vector<4x64xf32>
    %cst_30 = arith.constant dense<0.000000e+00> : vector<4x64xf32>
    %125 = tpu.matmul %116, %42, %cst_30 {dimension_numbers = #tpu.dot_dimension_numbers<[1], [0], [0], [1], [0, 0, 1, 1], [], []>} : vector<4x64xf32>, vector<64x64xf32>, vector<4x64xf32> -> vector<4x64xf32>
    %126 = arith.addf %124, %125 : vector<4x64xf32>
    %127 = math.tanh %126 : vector<4x64xf32>
    %c88 = arith.constant 88 : index
    %c0_31 = arith.constant 0 : index
    %128 = vector.load %arg1[%c88, %c0_31] : memref<224x128xf32, #tpu.memory_space<vmem>>, vector<64x64xf32>
    %cst_32 = arith.constant dense<0.000000e+00> : vector<4x64xf32>
    %129 = tpu.matmul %127, %128, %cst_32 {dimension_numbers = #tpu.dot_dimension_numbers<[1], [0], [0], [1], [0, 0, 1, 1], [], []>} : vector<4x64xf32>, vector<64x64xf32>, vector<4x64xf32> -> vector<4x64xf32>
    %c128 = arith.constant 128 : index
    %c64_33 = arith.constant 64 : index
    %130 = vector.load %arg1[%c128, %c64_33] : memref<224x128xf32, #tpu.memory_space<vmem>>, vector<1x64xf32>
    %131 = vector.broadcast %130 : vector<1x64xf32> to vector<4x64xf32>
    %132 = arith.addf %129, %131 : vector<4x64xf32>
    %cst_34 = arith.constant 0.000000e+00 : f32
    %133 = vector.broadcast %cst_34 : f32 to vector<4x64xf32>
    %134 = arith.maximumf %132, %133 : vector<4x64xf32>
    %c136 = arith.constant 136 : index
    %c64_35 = arith.constant 64 : index
    %135 = vector.load %arg1[%c136, %c64_35] : memref<224x128xf32, #tpu.memory_space<vmem>>, vector<64x64xf32>
    %cst_36 = arith.constant dense<0.000000e+00> : vector<4x64xf32>
    %136 = tpu.matmul %134, %135, %cst_36 {dimension_numbers = #tpu.dot_dimension_numbers<[1], [0], [0], [1], [0, 0, 1, 1], [], []>} : vector<4x64xf32>, vector<64x64xf32>, vector<4x64xf32> -> vector<4x64xf32>
    %c152 = arith.constant 152 : index
    %c0_37 = arith.constant 0 : index
    %137 = vector.load %arg1[%c152, %c0_37] : memref<224x128xf32, #tpu.memory_space<vmem>>, vector<1x64xf32>
    %138 = vector.broadcast %137 : vector<1x64xf32> to vector<4x64xf32>
    %139 = arith.addf %136, %138 : vector<4x64xf32>
    %cst_38 = arith.constant 0.000000e+00 : f32
    %140 = vector.broadcast %cst_38 : f32 to vector<4x64xf32>
    %141 = arith.maximumf %139, %140 : vector<4x64xf32>
    %c160 = arith.constant 160 : index
    %c0_39 = arith.constant 0 : index
    %142 = vector.load %arg1[%c160, %c0_39] : memref<224x128xf32, #tpu.memory_space<vmem>>, vector<64x1xf32>
    %cst_40 = arith.constant dense<0.000000e+00> : vector<4x1xf32>
    %143 = tpu.matmul %141, %142, %cst_40 {dimension_numbers = #tpu.dot_dimension_numbers<[1], [0], [0], [1], [0, 0, 1, 1], [], []>} : vector<4x64xf32>, vector<64x1xf32>, vector<4x1xf32> -> vector<4x1xf32>
    %c200 = arith.constant 200 : index
    %c64_41 = arith.constant 64 : index
    %144 = vector.load %arg1[%c200, %c64_41] : memref<224x128xf32, #tpu.memory_space<vmem>>, vector<1x1xf32>
    %145 = vector.broadcast %144 : vector<1x1xf32> to vector<4x1xf32>
    %146 = arith.addf %143, %145 : vector<4x1xf32>
    %c0_42 = arith.constant 0 : index
    %c0_43 = arith.constant 0 : index
    %147 = vector.load %arg2[%c0_42, %c0_43] : memref<4x1xf32, #tpu.memory_space<vmem>>, vector<4x1xf32>
    tpu.vector_store %arg2[%c0_42, %c0_43], %146 {strides = array<i32>} : memref<4x1xf32, #tpu.memory_space<vmem>>, vector<4x1xf32>,
    return
  }
}

</mosaic_0001>

<llo_original>
// kernel: tpu_custom_call.1
$region0: #{tpu_custom_call.1}
  #allocation0 [shape = 'u32[]', space=smem, size = 0x4, offset = 0x4, fixed_abs, tag = 'smem constant byte address 0x4 - core index']
  #allocation1 [shape = 'u32[72,128]{1,0:T(1,128)}', space=vmem, size = 0x9000, scoped, tag = 'internal scratch']
  %s0 = inlined_call_operand.vmem [shape: f32[4,8,5], index: 0, kind: input, shape index: {}]
  %s1 = inlined_call_operand.hbm [shape: f32[224,128], index: 1, kind: input, shape index: {}]
  %s2 = inlined_call_operand.vmem [shape: f32[4,1], index: 2, kind: output, shape index: {}]
  %s3 = sld [smem:[#allocation0]]
  $region22: #{tpu_custom_call.1} parent=0
    _
  %s5 = ssub.s32 1, %s3
  %s6 = scalar_select 0, %s5, %s3
  $region1: #{tpu_custom_call.1} parent=0
    #allocation2 [shape = 'u8[114688]{0}', space=vmem, size = 0x1c000, scoped, tag = 'input window, operand 1, single buffered']
    #allocation3 [shape = 's32[1]{0}', space=sflag, size = 0x4, scoped, tag = 'scoped memory for tpu_custom_call.1']
    %7 = vsyncpa [#allocation3], 0
    // Predicated region
    $region2: #{tpu_custom_call.1} parent=1 // pred_check
      _
    $region3: #{tpu_custom_call.1} parent=1 // pred_check_branch
      %9 = sbr.rel (0) target = $region5
    $region4: #{tpu_custom_call.1} parent=1 // pred_region
      _
    $region5: #{tpu_custom_call.1} parent=1 // pred_fallthru
      _
    // Predicated region
    $region6: #{tpu_custom_call.1} parent=1 // pred_check
      _
    $region7: #{tpu_custom_call.1} parent=1 // pred_check_branch
      %11 = sbr.rel (0) target = $region9
    $region8: #{tpu_custom_call.1} parent=1 // pred_region
      %13 = vsyncadd [#allocation3], 0
      %s14 = sshll.u32 %s1, 4
      %s15 = int_to_ptr.hbm [resolvable:$true] %s14
      %s16 = sshll.u32 [#allocation2], 4
      %s17 = int_to_ptr.vmem [resolvable:$true] %s16
      %22 = dma.hbm_to_vmem [thread:$0]  %s15, 3584, %s17, [#allocation3], 128, 128, 8
    $region9: #{tpu_custom_call.1} parent=1 // pred_fallthru
      _
    // Predicated region
    $region10: #{tpu_custom_call.1} parent=1 // pred_check
      _
    $region11: #{tpu_custom_call.1} parent=1 // pred_check_branch
      %24 = sbr.rel (0) target = $region13
    $region12: #{tpu_custom_call.1} parent=1 // pred_region
      %26 = dma.done [#allocation3], 3584
    $region13: #{tpu_custom_call.1} parent=1 // pred_fallthru
      _
    %v27 = vld [vmem:[%s0] sm:$0xff]
    %v28 = vld [vmem:[%s0 + $0x8] sm:$0xff]
    %v29 = vld [vmem:[%s0 + $0x10] sm:$0xff]
    %v30 = vld [vmem:[%s0 + $0x18] sm:$0xff]
    %v31 = vld [vmem:[#allocation2] sm:$0x1f]
    %v32 = vld [vmem:[#allocation2 + $0x8] sm:$0x1]
    %34 = vset.pattern.permute.xlu0 0
    %35 = vperm.xlu0 %34, %v27
    %v36 = vpop.permute.xlu0 %35
    %39 = vset.pattern.permute.xlu0 0
    %40 = vperm.xlu0 %39, %v28
    %v41 = vpop.permute.xlu0 %40
    %44 = vset.pattern.permute.xlu0 0
    %45 = vperm.xlu0 %44, %v29
    %v46 = vpop.permute.xlu0 %45
    %49 = vset.pattern.permute.xlu0 0
    %50 = vperm.xlu0 %49, %v30
    %v51 = vpop.permute.xlu0 %50
    %v53 = vperm.slane %v31, 0
    %v54 = vmul.f32 %v36, %v53
    %v55 = vmul.f32 %v41, %v53
    %v56 = vmul.f32 %v46, %v53
    %v57 = vmul.f32 %v51, %v53
    %58 = vset.pattern.permute.xlu0 1
    %59 = vperm.xlu0 %58, %v27
    %v60 = vpop.permute.xlu0 %59
    %62 = vset.pattern.permute.xlu0 1
    %63 = vperm.xlu0 %62, %v28
    %v64 = vpop.permute.xlu0 %63
    %66 = vset.pattern.permute.xlu0 1
    %67 = vperm.xlu0 %66, %v29
    %v68 = vpop.permute.xlu0 %67
    %70 = vset.pattern.permute.xlu0 1
    %71 = vperm.xlu0 %70, %v30
    %v72 = vpop.permute.xlu0 %71
    %v74 = vperm.slane %v31, 1
    %v75 = vmul.f32 %v60, %v74
    %v76 = vmul.f32 %v64, %v74
    %v77 = vmul.f32 %v68, %v74
    %v78 = vmul.f32 %v72, %v74
    %v79 = vadd.f32 %v54, %v75
    %v80 = vadd.f32 %v55, %v76
    %v81 = vadd.f32 %v56, %v77
    %v82 = vadd.f32 %v57, %v78
    %83 = vset.pattern.permute.xlu0 2
    %84 = vperm.xlu0 %83, %v27
    %v85 = vpop.permute.xlu0 %84
    %87 = vset.pattern.permute.xlu0 2
    %88 = vperm.xlu0 %87, %v28
    %v89 = vpop.permute.xlu0 %88
    %91 = vset.pattern.permute.xlu0 2
    %92 = vperm.xlu0 %91, %v29
    %v93 = vpop.permute.xlu0 %92
    %95 = vset.pattern.permute.xlu0 2
    %96 = vperm.xlu0 %95, %v30
    %v97 = vpop.permute.xlu0 %96
    %v99 = vperm.slane %v31, 2
    %v100 = vmul.f32 %v85, %v99
    %v101 = vmul.f32 %v89, %v99
    %v102 = vmul.f32 %v93, %v99
    %v103 = vmul.f32 %v97, %v99
    %v104 = vadd.f32 %v79, %v100
    %v105 = vadd.f32 %v80, %v101
    %v106 = vadd.f32 %v81, %v102
    %v107 = vadd.f32 %v82, %v103
    %108 = vset.pattern.permute.xlu0 3
    %109 = vperm.xlu0 %108, %v27
    %v110 = vpop.permute.xlu0 %109
    %112 = vset.pattern.permute.xlu0 3
    %113 = vperm.xlu0 %112, %v28
    %v114 = vpop.permute.xlu0 %113
    %116 = vset.pattern.permute.xlu0 3
    %117 = vperm.xlu0 %116, %v29
    %v118 = vpop.permute.xlu0 %117
    %120 = vset.pattern.permute.xlu0 3
    %121 = vperm.xlu0 %120, %v30
    %v122 = vpop.permute.xlu0 %121
    %v124 = vperm.slane %v31, 3
    %v125 = vmul.f32 %v110, %v124
    %v126 = vmul.f32 %v114, %v124
    %v127 = vmul.f32 %v118, %v124
    %v128 = vmul.f32 %v122, %v124
    %v129 = vadd.f32 %v104, %v125
    %v130 = vadd.f32 %v105, %v126
    %v131 = vadd.f32 %v106, %v127
    %v132 = vadd.f32 %v107, %v128
    %133 = vset.pattern.permute.xlu0 4
    %134 = vperm.xlu0 %133, %v27
    %v135 = vpop.permute.xlu0 %134
    %137 = vset.pattern.permute.xlu0 4
    %138 = vperm.xlu0 %137, %v28
    %v139 = vpop.permute.xlu0 %138
    %141 = vset.pattern.permute.xlu0 4
    %142 = vperm.xlu0 %141, %v29
    %v143 = vpop.permute.xlu0 %142
    %145 = vset.pattern.permute.xlu0 4
    %146 = vperm.xlu0 %145, %v30
    %v147 = vpop.permute.xlu0 %146
    %v149 = vperm.slane %v31, 4
    %v150 = vmul.f32 %v135, %v149
    %v151 = vmul.f32 %v139, %v149
    %v152 = vmul.f32 %v143, %v149
    %v153 = vmul.f32 %v147, %v149
    %v154 = vadd.f32 %v129, %v150
    %v155 = vadd.f32 %v130, %v151
    %v156 = vadd.f32 %v131, %v152
    %v157 = vadd.f32 %v132, %v153
    %v158 = vperm.slane %v32, 0
    %v159 = vadd.f32 %v154, %v158
    %v160 = vadd.f32 %v155, %v158
    %v161 = vadd.f32 %v156, %v158
    %v162 = vadd.f32 %v157, %v158
    %v163 = vld [vmem:[#allocation2] sm:$0xff]
    %v164 = vld [vmem:[#allocation2 + $0x8] sm:$0xff]
    %v165 = vld [vmem:[#allocation2 + $0x10] sm:$0xff]
    %v166 = vld [vmem:[#allocation2 + $0x18] sm:$0xff]
    %v167 = vld [vmem:[#allocation2 + $0x20] sm:$0xff]
    %v168 = vld [vmem:[#allocation2 + $0x28] sm:$0xff]
    %v169 = vld [vmem:[#allocation2 + $0x30] sm:$0xff]
    %v170 = vld [vmem:[#allocation2 + $0x38] sm:$0xff]
    %v171 = vld [vmem:[#allocation2 + $0x40] sm:$0xff]
    %v172 = vld [vmem:[#allocation2 + $0x48] sm:$0xff]
    %v173 = vld [vmem:[#allocation2 + $0x50] sm:$0xff]
    %v174 = vld [vmem:[#allocation2 + $0x58] sm:$0xff]
    %v175 = vld [vmem:[#allocation2 + $0x60] sm:$0xff]
    %v176 = vld [vmem:[#allocation2 + $0x68] sm:$0xff]
    %v177 = vld [vmem:[#allocation2 + $0x70] sm:$0xff]
    %v178 = vld [vmem:[#allocation2 + $0x78] sm:$0xff]
    %v179 = vld [vmem:[#allocation2 + $0x50] sm:$0x1]
    %v180 = vtanh.pop %v159
    %v181 = vtanh.pop %v160
    %v182 = vtanh.pop %v161
    %v183 = vtanh.pop %v162
    %v184 = vperm.slane %v179, 0
    %v189 = vrot.slane %v181, 7
    %vm190 = vcmask 1041409
    %v191 = vsel %vm190, %v189, %v180
    %v192 = vrot.slane %v182, 6
    %vm193 = vcmask 1042434
    %v194 = vsel %vm193, %v192, %v191
    %v195 = vrot.slane %v183, 5
    %vm196 = vcmask 1043459
    %v197 = vsel %vm196, %v195, %v194
    %vm198 = vcmask 523264
    %v199 = vsel %vm198, %v197, 0
    %201 = vmatpush.msra.mxu0 0.0
    %202 = vmatpush.msra.mxu0 0.0
    %203 = vmatpush.msra.mxu0 0.0
    %204 = vmatpush.msra.mxu0 0.0
    %205 = vmatpush.msra.mxu0 0.0
    %206 = vmatpush.msra.mxu0 0.0
    %207 = vmatpush.msra.mxu0 0.0
    %208 = vmatpush.msra.mxu0 0.0
    %209 = vmatpush.msra.mxu0 %v172
    %210 = vmatpush.msra.mxu0 %v171
    %211 = vmatpush.msra.mxu0 %v170
    %212 = vmatpush.msra.mxu0 %v169
    %213 = vmatpush.msra.mxu0 %v168
    %214 = vmatpush.msra.mxu0 %v167
    %215 = vmatpush.msra.mxu0 %v166
    %216 = vmatpush.msra.mxu0 %v165
    %217 = vmatmul.f32.gmra.mxu0 %v199
    %v218 = vpop.f32.mrf.mxu0
    %v219 = vadd.f32 %v184, %v218
    %220 = vdwg.mxu0
    %v221 = vtanh.pop %v219
    %230 = vrot.lane.b32.xlu0 %v163, 64
    %v231 = vpop.permute.xlu0 %230
    %232 = vrot.lane.b32.xlu0 %v164, 64
    %v233 = vpop.permute.xlu0 %232
    %234 = vrot.lane.b32.xlu0 %v165, 64
    %v235 = vpop.permute.xlu0 %234
    %236 = vrot.lane.b32.xlu0 %v166, 64
    %v237 = vpop.permute.xlu0 %236
    %238 = vrot.lane.b32.xlu0 %v167, 64
    %v239 = vpop.permute.xlu0 %238
    %240 = vrot.lane.b32.xlu0 %v168, 64
    %v241 = vpop.permute.xlu0 %240
    %242 = vrot.lane.b32.xlu0 %v169, 64
    %v243 = vpop.permute.xlu0 %242
    %244 = vrot.lane.b32.xlu0 %v170, 64
    %v245 = vpop.permute.xlu0 %244
    %254 = vmatpush.msra.mxu0 0.0
    %255 = vmatpush.msra.mxu0 0.0
    %256 = vmatpush.msra.mxu0 0.0
    %257 = vmatpush.msra.mxu0 0.0
    %258 = vmatpush.msra.mxu0 0.0
    %259 = vmatpush.msra.mxu0 0.0
    %260 = vmatpush.msra.mxu0 0.0
    %261 = vmatpush.msra.mxu0 0.0
    %262 = vmatpush.msra.mxu0 %v245
    %263 = vmatpush.msra.mxu0 %v243
    %264 = vmatpush.msra.mxu0 %v241
    %265 = vmatpush.msra.mxu0 %v239
    %266 = vmatpush.msra.mxu0 %v237
    %267 = vmatpush.msra.mxu0 %v235
    %268 = vmatpush.msra.mxu0 %v233
    %269 = vmatpush.msra.mxu0 %v231
    %270 = vmatmul.f32.gmra.mxu0 %v199
    %v271 = vpop.f32.mrf.mxu0
    %v272 = vadd.f32 0.0, %v271
    %273 = vdwg.mxu0
    %v275 = vrot.slane %v272, 7
    %v276 = vrot.slane %v272, 1
    %v277 = vrot.slane %v272, 2
    %v282 = vadd.f32 %v159, %v275
    %v283 = vadd.f32 %v160, %v272
    %v284 = vadd.f32 %v161, %v276
    %v285 = vadd.f32 %v162, %v277
    %v286 = vtanh.pop %v282
    %v287 = vtanh.pop %v283
    %v288 = vtanh.pop %v284
    %v289 = vtanh.pop %v285
    %v294 = vrot.slane %v286, 1
    %v295 = vsel %vm190, %v287, %v294
    %v296 = vrot.slane %v288, 7
    %v297 = vsel %vm193, %v296, %v295
    %v298 = vrot.slane %v289, 6
    %v299 = vsel %vm196, %v298, %v297
    %v300 = vsel %vm198, %v299, 0
    %302 = vmatpush.msra.mxu0 0.0
    %303 = vmatpush.msra.mxu0 0.0
    %304 = vmatpush.msra.mxu0 0.0
    %305 = vmatpush.msra.mxu0 0.0
    %306 = vmatpush.msra.mxu0 0.0
    %307 = vmatpush.msra.mxu0 0.0
    %308 = vmatpush.msra.mxu0 0.0
    %309 = vmatpush.msra.mxu0 0.0
    %310 = vmatpush.msra.mxu0 %v172
    %311 = vmatpush.msra.mxu0 %v171
    %312 = vmatpush.msra.mxu0 %v170
    %313 = vmatpush.msra.mxu0 %v169
    %314 = vmatpush.msra.mxu0 %v168
    %315 = vmatpush.msra.mxu0 %v167
    %316 = vmatpush.msra.mxu0 %v166
    %317 = vmatpush.msra.mxu0 %v165
    %318 = vmatmul.f32.gmra.mxu0 %v300
    %v319 = vpop.f32.mrf.mxu0
    %v320 = vadd.f32 %v184, %v319
    %321 = vdwg.mxu0
    %330 = vrot.lane.b32.xlu0 %v171, 64
    %v331 = vpop.permute.xlu0 %330
    %332 = vrot.lane.b32.xlu0 %v172, 64
    %v333 = vpop.permute.xlu0 %332
    %334 = vrot.lane.b32.xlu0 %v173, 64
    %v335 = vpop.permute.xlu0 %334
    %336 = vrot.lane.b32.xlu0 %v174, 64
    %v337 = vpop.permute.xlu0 %336
    %338 = vrot.lane.b32.xlu0 %v175, 64
    %v339 = vpop.permute.xlu0 %338
    %340 = vrot.lane.b32.xlu0 %v176, 64
    %v341 = vpop.permute.xlu0 %340
    %342 = vrot.lane.b32.xlu0 %v177, 64
    %v343 = vpop.permute.xlu0 %342
    %344 = vrot.lane.b32.xlu0 %v178, 64
    %v345 = vpop.permute.xlu0 %344
    %v355 = vsel %vm198, %v221, 0
    %357 = vmatpush.msra.mxu0 0.0
    %358 = vmatpush.msra.mxu0 0.0
    %359 = vmatpush.msra.mxu0 0.0
    %360 = vmatpush.msra.mxu0 0.0
    %361 = vmatpush.msra.mxu0 0.0
    %362 = vmatpush.msra.mxu0 0.0
    %363 = vmatpush.msra.mxu0 0.0
    %364 = vmatpush.msra.mxu0 0.0
    %365 = vmatpush.msra.mxu0 %v345
    %366 = vmatpush.msra.mxu0 %v343
    %367 = vmatpush.msra.mxu0 %v341
    %368 = vmatpush.msra.mxu0 %v339
    %369 = vmatpush.msra.mxu0 %v337
    %370 = vmatpush.msra.mxu0 %v335
    %371 = vmatpush.msra.mxu0 %v333
    %372 = vmatpush.msra.mxu0 %v331
    %373 = vmatmul.f32.gmra.mxu0 %v355
    %v374 = vpop.f32.mrf.mxu0
    %v375 = vadd.f32 0.0, %v374
    %376 = vdwg.mxu0
    %v377 = vadd.f32 %v320, %v375
    %v378 = vtanh.pop %v377
    %379 = vmatpush.msra.mxu0 0.0
    %380 = vmatpush.msra.mxu0 0.0
    %381 = vmatpush.msra.mxu0 0.0
    %382 = vmatpush.msra.mxu0 0.0
    %383 = vmatpush.msra.mxu0 0.0
    %384 = vmatpush.msra.mxu0 0.0
    %385 = vmatpush.msra.mxu0 0.0
    %386 = vmatpush.msra.mxu0 0.0
    %387 = vmatpush.msra.mxu0 %v245
    %388 = vmatpush.msra.mxu0 %v243
    %389 = vmatpush.msra.mxu0 %v241
    %390 = vmatpush.msra.mxu0 %v239
    %391 = vmatpush.msra.mxu0 %v237
    %392 = vmatpush.msra.mxu0 %v235
    %393 = vmatpush.msra.mxu0 %v233
    %394 = vmatpush.msra.mxu0 %v231
    %395 = vmatmul.f32.gmra.mxu0 %v300
    %v396 = vpop.f32.mrf.mxu0
    %v397 = vadd.f32 0.0, %v396
    %398 = vdwg.mxu0
    %v400 = vrot.slane %v397, 6
    %v401 = vrot.slane %v397, 7
    %v402 = vrot.slane %v397, 1
    %v407 = vadd.f32 %v159, %v400
    %v408 = vadd.f32 %v160, %v401
    %v409 = vadd.f32 %v161, %v397
    %v410 = vadd.f32 %v162, %v402
    %v411 = vtanh.pop %v407
    %v412 = vtanh.pop %v408
    %v413 = vtanh.pop %v409
    %v414 = vtanh.pop %v410
    %v419 = vrot.slane %v411, 2
    %v420 = vrot.slane %v412, 1
    %v421 = vsel %vm190, %v420, %v419
    %v422 = vsel %vm193, %v413, %v421
    %v423 = vrot.slane %v414, 7
    %v424 = vsel %vm196, %v423, %v422
    %v425 = vsel %vm198, %v424, 0
    %427 = vmatpush.msra.mxu0 0.0
    %428 = vmatpush.msra.mxu0 0.0
    %429 = vmatpush.msra.mxu0 0.0
    %430 = vmatpush.msra.mxu0 0.0
    %431 = vmatpush.msra.mxu0 0.0
    %432 = vmatpush.msra.mxu0 0.0
    %433 = vmatpush.msra.mxu0 0.0
    %434 = vmatpush.msra.mxu0 0.0
    %435 = vmatpush.msra.mxu0 %v172
    %436 = vmatpush.msra.mxu0 %v171
    %437 = vmatpush.msra.mxu0 %v170
    %438 = vmatpush.msra.mxu0 %v169
    %439 = vmatpush.msra.mxu0 %v168
    %440 = vmatpush.msra.mxu0 %v167
    %441 = vmatpush.msra.mxu0 %v166
    %442 = vmatpush.msra.mxu0 %v165
    %443 = vmatmul.f32.gmra.mxu0 %v425
    %v444 = vpop.f32.mrf.mxu0
    %v445 = vadd.f32 %v184, %v444
    %446 = vdwg.mxu0
    %v448 = vsel %vm198, %v378, 0
    %450 = vmatpush.msra.mxu0 0.0
    %451 = vmatpush.msra.mxu0 0.0
    %452 = vmatpush.msra.mxu0 0.0
    %453 = vmatpush.msra.mxu0 0.0
    %454 = vmatpush.msra.mxu0 0.0
    %455 = vmatpush.msra.mxu0 0.0
    %456 = vmatpush.msra.mxu0 0.0
    %457 = vmatpush.msra.mxu0 0.0
    %458 = vmatpush.msra.mxu0 %v345
    %459 = vmatpush.msra.mxu0 %v343
    %460 = vmatpush.msra.mxu0 %v341
    %461 = vmatpush.msra.mxu0 %v339
    %462 = vmatpush.msra.mxu0 %v337
    %463 = vmatpush.msra.mxu0 %v335
    %464 = vmatpush.msra.mxu0 %v333
    %465 = vmatpush.msra.mxu0 %v331
    %466 = vmatmul.f32.gmra.mxu0 %v448
    %v467 = vpop.f32.mrf.mxu0
    %v468 = vadd.f32 0.0, %v467
    %469 = vdwg.mxu0
    %v470 = vadd.f32 %v445, %v468
    %v471 = vtanh.pop %v470
    %472 = vmatpush.msra.mxu0 0.0
    %473 = vmatpush.msra.mxu0 0.0
    %474 = vmatpush.msra.mxu0 0.0
    %475 = vmatpush.msra.mxu0 0.0
    %476 = vmatpush.msra.mxu0 0.0
    %477 = vmatpush.msra.mxu0 0.0
    %478 = vmatpush.msra.mxu0 0.0
    %479 = vmatpush.msra.mxu0 0.0
    %480 = vmatpush.msra.mxu0 %v245
    %481 = vmatpush.msra.mxu0 %v243
    %482 = vmatpush.msra.mxu0 %v241
    %483 = vmatpush.msra.mxu0 %v239
    %484 = vmatpush.msra.mxu0 %v237
    %485 = vmatpush.msra.mxu0 %v235
    %486 = vmatpush.msra.mxu0 %v233
    %487 = vmatpush.msra.mxu0 %v231
    %488 = vmatmul.f32.gmra.mxu0 %v425
    %v489 = vpop.f32.mrf.mxu0
    %v490 = vadd.f32 0.0, %v489
    %491 = vdwg.mxu0
    %v493 = vrot.slane %v490, 5
    %v494 = vrot.slane %v490, 6
    %v495 = vrot.slane %v490, 7
    %v500 = vadd.f32 %v159, %v493
    %v501 = vadd.f32 %v160, %v494
    %v502 = vadd.f32 %v161, %v495
    %v503 = vadd.f32 %v162, %v490
    %v504 = vtanh.pop %v500
    %v505 = vtanh.pop %v501
    %v506 = vtanh.pop %v502
    %v507 = vtanh.pop %v503
    %v512 = vrot.slane %v504, 3
    %v513 = vrot.slane %v505, 2
    %v514 = vsel %vm190, %v513, %v512
    %v515 = vrot.slane %v506, 1
    %v516 = vsel %vm193, %v515, %v514
    %v517 = vsel %vm196, %v507, %v516
    %v518 = vsel %vm198, %v517, 0
    %520 = vmatpush.msra.mxu0 0.0
    %521 = vmatpush.msra.mxu0 0.0
    %522 = vmatpush.msra.mxu0 0.0
    %523 = vmatpush.msra.mxu0 0.0
    %524 = vmatpush.msra.mxu0 0.0
    %525 = vmatpush.msra.mxu0 0.0
    %526 = vmatpush.msra.mxu0 0.0
    %527 = vmatpush.msra.mxu0 0.0
    %528 = vmatpush.msra.mxu0 %v172
    %529 = vmatpush.msra.mxu0 %v171
    %530 = vmatpush.msra.mxu0 %v170
    %531 = vmatpush.msra.mxu0 %v169
    %532 = vmatpush.msra.mxu0 %v168
    %533 = vmatpush.msra.mxu0 %v167
    %534 = vmatpush.msra.mxu0 %v166
    %535 = vmatpush.msra.mxu0 %v165
    %536 = vmatmul.f32.gmra.mxu0 %v518
    %v537 = vpop.f32.mrf.mxu0
    %v538 = vadd.f32 %v184, %v537
    %539 = vdwg.mxu0
    %v541 = vsel %vm198, %v471, 0
    %543 = vmatpush.msra.mxu0 0.0
    %544 = vmatpush.msra.mxu0 0.0
    %545 = vmatpush.msra.mxu0 0.0
    %546 = vmatpush.msra.mxu0 0.0
    %547 = vmatpush.msra.mxu0 0.0
    %548 = vmatpush.msra.mxu0 0.0
    %549 = vmatpush.msra.mxu0 0.0
    %550 = vmatpush.msra.mxu0 0.0
    %551 = vmatpush.msra.mxu0 %v345
    %552 = vmatpush.msra.mxu0 %v343
    %553 = vmatpush.msra.mxu0 %v341
    %554 = vmatpush.msra.mxu0 %v339
    %555 = vmatpush.msra.mxu0 %v337
    %556 = vmatpush.msra.mxu0 %v335
    %557 = vmatpush.msra.mxu0 %v333
    %558 = vmatpush.msra.mxu0 %v331
    %559 = vmatmul.f32.gmra.mxu0 %v541
    %v560 = vpop.f32.mrf.mxu0
    %v561 = vadd.f32 0.0, %v560
    %562 = vdwg.mxu0
    %v563 = vadd.f32 %v538, %v561
    %v564 = vtanh.pop %v563
    %565 = vmatpush.msra.mxu0 0.0
    %566 = vmatpush.msra.mxu0 0.0
    %567 = vmatpush.msra.mxu0 0.0
    %568 = vmatpush.msra.mxu0 0.0
    %569 = vmatpush.msra.mxu0 0.0
    %570 = vmatpush.msra.mxu0 0.0
    %571 = vmatpush.msra.mxu0 0.0
    %572 = vmatpush.msra.mxu0 0.0
    %573 = vmatpush.msra.mxu0 %v245
    %574 = vmatpush.msra.mxu0 %v243
    %575 = vmatpush.msra.mxu0 %v241
    %576 = vmatpush.msra.mxu0 %v239
    %577 = vmatpush.msra.mxu0 %v237
    %578 = vmatpush.msra.mxu0 %v235
    %579 = vmatpush.msra.mxu0 %v233
    %580 = vmatpush.msra.mxu0 %v231
    %581 = vmatmul.f32.gmra.mxu0 %v518
    %v582 = vpop.f32.mrf.mxu0
    %v583 = vadd.f32 0.0, %v582
    %584 = vdwg.mxu0
    %v586 = vrot.slane %v583, 4
    %v587 = vrot.slane %v583, 5
    %v588 = vrot.slane %v583, 6
    %v589 = vrot.slane %v583, 7
    %v594 = vadd.f32 %v159, %v586
    %v595 = vadd.f32 %v160, %v587
    %v596 = vadd.f32 %v161, %v588
    %v597 = vadd.f32 %v162, %v589
    %v598 = vtanh.pop %v594
    %v599 = vtanh.pop %v595
    %v600 = vtanh.pop %v596
    %v601 = vtanh.pop %v597
    %v606 = vrot.slane %v598, 4
    %v607 = vrot.slane %v599, 3
    %v608 = vsel %vm190, %v607, %v606
    %v609 = vrot.slane %v600, 2
    %v610 = vsel %vm193, %v609, %v608
    %v611 = vrot.slane %v601, 1
    %v612 = vsel %vm196, %v611, %v610
    %v613 = vsel %vm198, %v612, 0
    %615 = vmatpush.msra.mxu0 0.0
    %616 = vmatpush.msra.mxu0 0.0
    %617 = vmatpush.msra.mxu0 0.0
    %618 = vmatpush.msra.mxu0 0.0
    %619 = vmatpush.msra.mxu0 0.0
    %620 = vmatpush.msra.mxu0 0.0
    %621 = vmatpush.msra.mxu0 0.0
    %622 = vmatpush.msra.mxu0 0.0
    %623 = vmatpush.msra.mxu0 %v172
    %624 = vmatpush.msra.mxu0 %v171
    %625 = vmatpush.msra.mxu0 %v170
    %626 = vmatpush.msra.mxu0 %v169
    %627 = vmatpush.msra.mxu0 %v168
    %628 = vmatpush.msra.mxu0 %v167
    %629 = vmatpush.msra.mxu0 %v166
    %630 = vmatpush.msra.mxu0 %v165
    %631 = vmatmul.f32.gmra.mxu0 %v613
    %v632 = vpop.f32.mrf.mxu0
    %v633 = vadd.f32 %v184, %v632
    %634 = vdwg.mxu0
    %v636 = vsel %vm198, %v564, 0
    %638 = vmatpush.msra.mxu0 0.0
    %639 = vmatpush.msra.mxu0 0.0
    %640 = vmatpush.msra.mxu0 0.0
    %641 = vmatpush.msra.mxu0 0.0
    %642 = vmatpush.msra.mxu0 0.0
    %643 = vmatpush.msra.mxu0 0.0
    %644 = vmatpush.msra.mxu0 0.0
    %645 = vmatpush.msra.mxu0 0.0
    %646 = vmatpush.msra.mxu0 %v345
    %647 = vmatpush.msra.mxu0 %v343
    %648 = vmatpush.msra.mxu0 %v341
    %649 = vmatpush.msra.mxu0 %v339
    %650 = vmatpush.msra.mxu0 %v337
    %651 = vmatpush.msra.mxu0 %v335
    %652 = vmatpush.msra.mxu0 %v333
    %653 = vmatpush.msra.mxu0 %v331
    %654 = vmatmul.f32.gmra.mxu0 %v636
    %v655 = vpop.f32.mrf.mxu0
    %v656 = vadd.f32 0.0, %v655
    %657 = vdwg.mxu0
    %v658 = vadd.f32 %v633, %v656
    %v659 = vtanh.pop %v658
    %660 = vmatpush.msra.mxu0 0.0
    %661 = vmatpush.msra.mxu0 0.0
    %662 = vmatpush.msra.mxu0 0.0
    %663 = vmatpush.msra.mxu0 0.0
    %664 = vmatpush.msra.mxu0 0.0
    %665 = vmatpush.msra.mxu0 0.0
    %666 = vmatpush.msra.mxu0 0.0
    %667 = vmatpush.msra.mxu0 0.0
    %668 = vmatpush.msra.mxu0 %v245
    %669 = vmatpush.msra.mxu0 %v243
    %670 = vmatpush.msra.mxu0 %v241
    %671 = vmatpush.msra.mxu0 %v239
    %672 = vmatpush.msra.mxu0 %v237
    %673 = vmatpush.msra.mxu0 %v235
    %674 = vmatpush.msra.mxu0 %v233
    %675 = vmatpush.msra.mxu0 %v231
    %676 = vmatmul.f32.gmra.mxu0 %v613
    %v677 = vpop.f32.mrf.mxu0
    %v678 = vadd.f32 0.0, %v677
    %679 = vdwg.mxu0
    %v681 = vrot.slane %v678, 3
    %v682 = vrot.slane %v678, 4
    %v683 = vrot.slane %v678, 5
    %v684 = vrot.slane %v678, 6
    %v689 = vadd.f32 %v159, %v681
    %v690 = vadd.f32 %v160, %v682
    %v691 = vadd.f32 %v161, %v683
    %v692 = vadd.f32 %v162, %v684
    %v693 = vtanh.pop %v689
    %v694 = vtanh.pop %v690
    %v695 = vtanh.pop %v691
    %v696 = vtanh.pop %v692
    %v701 = vrot.slane %v693, 5
    %v702 = vrot.slane %v694, 4
    %v703 = vsel %vm190, %v702, %v701
    %v704 = vrot.slane %v695, 3
    %v705 = vsel %vm193, %v704, %v703
    %v706 = vrot.slane %v696, 2
    %v707 = vsel %vm196, %v706, %v705
    %v708 = vsel %vm198, %v707, 0
    %710 = vmatpush.msra.mxu0 0.0
    %711 = vmatpush.msra.mxu0 0.0
    %712 = vmatpush.msra.mxu0 0.0
    %713 = vmatpush.msra.mxu0 0.0
    %714 = vmatpush.msra.mxu0 0.0
    %715 = vmatpush.msra.mxu0 0.0
    %716 = vmatpush.msra.mxu0 0.0
    %717 = vmatpush.msra.mxu0 0.0
    %718 = vmatpush.msra.mxu0 %v172
    %719 = vmatpush.msra.mxu0 %v171
    %720 = vmatpush.msra.mxu0 %v170
    %721 = vmatpush.msra.mxu0 %v169
    %722 = vmatpush.msra.mxu0 %v168
    %723 = vmatpush.msra.mxu0 %v167
    %724 = vmatpush.msra.mxu0 %v166
    %725 = vmatpush.msra.mxu0 %v165
    %726 = vmatmul.f32.gmra.mxu0 %v708
    %v727 = vpop.f32.mrf.mxu0
    %v728 = vadd.f32 %v184, %v727
    %729 = vdwg.mxu0
    %v731 = vsel %vm198, %v659, 0
    %733 = vmatpush.msra.mxu0 0.0
    %734 = vmatpush.msra.mxu0 0.0
    %735 = vmatpush.msra.mxu0 0.0
    %736 = vmatpush.msra.mxu0 0.0
    %737 = vmatpush.msra.mxu0 0.0
    %738 = vmatpush.msra.mxu0 0.0
    %739 = vmatpush.msra.mxu0 0.0
    %740 = vmatpush.msra.mxu0 0.0
    %741 = vmatpush.msra.mxu0 %v345
    %742 = vmatpush.msra.mxu0 %v343
    %743 = vmatpush.msra.mxu0 %v341
    %744 = vmatpush.msra.mxu0 %v339
    %745 = vmatpush.msra.mxu0 %v337
    %746 = vmatpush.msra.mxu0 %v335
    %747 = vmatpush.msra.mxu0 %v333
    %748 = vmatpush.msra.mxu0 %v331
    %749 = vmatmul.f32.gmra.mxu0 %v731
    %v750 = vpop.f32.mrf.mxu0
    %v751 = vadd.f32 0.0, %v750
    %752 = vdwg.mxu0
    %v753 = vadd.f32 %v728, %v751
    %v754 = vtanh.pop %v753
    %755 = vmatpush.msra.mxu0 0.0
    %756 = vmatpush.msra.mxu0 0.0
    %757 = vmatpush.msra.mxu0 0.0
    %758 = vmatpush.msra.mxu0 0.0
    %759 = vmatpush.msra.mxu0 0.0
    %760 = vmatpush.msra.mxu0 0.0
    %761 = vmatpush.msra.mxu0 0.0
    %762 = vmatpush.msra.mxu0 0.0
    %763 = vmatpush.msra.mxu0 %v245
    %764 = vmatpush.msra.mxu0 %v243
    %765 = vmatpush.msra.mxu0 %v241
    %766 = vmatpush.msra.mxu0 %v239
    %767 = vmatpush.msra.mxu0 %v237
    %768 = vmatpush.msra.mxu0 %v235
    %769 = vmatpush.msra.mxu0 %v233
    %770 = vmatpush.msra.mxu0 %v231
    %771 = vmatmul.f32.gmra.mxu0 %v708
    %v772 = vpop.f32.mrf.mxu0
    %v773 = vadd.f32 0.0, %v772
    %774 = vdwg.mxu0
    %v776 = vrot.slane %v773, 2
    %v777 = vrot.slane %v773, 3
    %v778 = vrot.slane %v773, 4
    %v779 = vrot.slane %v773, 5
    %v784 = vadd.f32 %v159, %v776
    %v785 = vadd.f32 %v160, %v777
    %v786 = vadd.f32 %v161, %v778
    %v787 = vadd.f32 %v162, %v779
    %v788 = vtanh.pop %v784
    %v789 = vtanh.pop %v785
    %v790 = vtanh.pop %v786
    %v791 = vtanh.pop %v787
    %v796 = vrot.slane %v788, 6
    %v797 = vrot.slane %v789, 5
    %v798 = vsel %vm190, %v797, %v796
    %v799 = vrot.slane %v790, 4
    %v800 = vsel %vm193, %v799, %v798
    %v801 = vrot.slane %v791, 3
    %v802 = vsel %vm196, %v801, %v800
    %v803 = vsel %vm198, %v802, 0
    %805 = vmatpush.msra.mxu0 0.0
    %806 = vmatpush.msra.mxu0 0.0
    %807 = vmatpush.msra.mxu0 0.0
    %808 = vmatpush.msra.mxu0 0.0
    %809 = vmatpush.msra.mxu0 0.0
    %810 = vmatpush.msra.mxu0 0.0
    %811 = vmatpush.msra.mxu0 0.0
    %812 = vmatpush.msra.mxu0 0.0
    %813 = vmatpush.msra.mxu0 %v172
    %814 = vmatpush.msra.mxu0 %v171
    %815 = vmatpush.msra.mxu0 %v170
    %816 = vmatpush.msra.mxu0 %v169
    %817 = vmatpush.msra.mxu0 %v168
    %818 = vmatpush.msra.mxu0 %v167
    %819 = vmatpush.msra.mxu0 %v166
    %820 = vmatpush.msra.mxu0 %v165
    %821 = vmatmul.f32.gmra.mxu0 %v803
    %v822 = vpop.f32.mrf.mxu0
    %v823 = vadd.f32 %v184, %v822
    %824 = vdwg.mxu0
    %v826 = vsel %vm198, %v754, 0
    %828 = vmatpush.msra.mxu0 0.0
    %829 = vmatpush.msra.mxu0 0.0
    %830 = vmatpush.msra.mxu0 0.0
    %831 = vmatpush.msra.mxu0 0.0
    %832 = vmatpush.msra.mxu0 0.0
    %833 = vmatpush.msra.mxu0 0.0
    %834 = vmatpush.msra.mxu0 0.0
    %835 = vmatpush.msra.mxu0 0.0
    %836 = vmatpush.msra.mxu0 %v345
    %837 = vmatpush.msra.mxu0 %v343
    %838 = vmatpush.msra.mxu0 %v341
    %839 = vmatpush.msra.mxu0 %v339
    %840 = vmatpush.msra.mxu0 %v337
    %841 = vmatpush.msra.mxu0 %v335
    %842 = vmatpush.msra.mxu0 %v333
    %843 = vmatpush.msra.mxu0 %v331
    %844 = vmatmul.f32.gmra.mxu0 %v826
    %v845 = vpop.f32.mrf.mxu0
    %v846 = vadd.f32 0.0, %v845
    %847 = vdwg.mxu0
    %v848 = vadd.f32 %v823, %v846
    %v849 = vtanh.pop %v848
    %850 = vmatpush.msra.mxu0 0.0
    %851 = vmatpush.msra.mxu0 0.0
    %852 = vmatpush.msra.mxu0 0.0
    %853 = vmatpush.msra.mxu0 0.0
    %854 = vmatpush.msra.mxu0 0.0
    %855 = vmatpush.msra.mxu0 0.0
    %856 = vmatpush.msra.mxu0 0.0
    %857 = vmatpush.msra.mxu0 0.0
    %858 = vmatpush.msra.mxu0 %v245
    %859 = vmatpush.msra.mxu0 %v243
    %860 = vmatpush.msra.mxu0 %v241
    %861 = vmatpush.msra.mxu0 %v239
    %862 = vmatpush.msra.mxu0 %v237
    %863 = vmatpush.msra.mxu0 %v235
    %864 = vmatpush.msra.mxu0 %v233
    %865 = vmatpush.msra.mxu0 %v231
    %866 = vmatmul.f32.gmra.mxu0 %v803
    %v867 = vpop.f32.mrf.mxu0
    %v868 = vadd.f32 0.0, %v867
    %869 = vdwg.mxu0
    %v871 = vrot.slane %v868, 1
    %v872 = vrot.slane %v868, 2
    %v873 = vrot.slane %v868, 3
    %v874 = vrot.slane %v868, 4
    %v879 = vadd.f32 %v159, %v871
    %v880 = vadd.f32 %v160, %v872
    %v881 = vadd.f32 %v161, %v873
    %v882 = vadd.f32 %v162, %v874
    %v883 = vtanh.pop %v879
    %v884 = vtanh.pop %v880
    %v885 = vtanh.pop %v881
    %v886 = vtanh.pop %v882
    %v891 = vrot.slane %v883, 7
    %v892 = vrot.slane %v884, 6
    %v893 = vsel %vm190, %v892, %v891
    %v894 = vrot.slane %v885, 5
    %v895 = vsel %vm193, %v894, %v893
    %v896 = vrot.slane %v886, 4
    %v897 = vsel %vm196, %v896, %v895
    %v898 = vsel %vm198, %v897, 0
    %900 = vmatpush.msra.mxu0 0.0
    %901 = vmatpush.msra.mxu0 0.0
    %902 = vmatpush.msra.mxu0 0.0
    %903 = vmatpush.msra.mxu0 0.0
    %904 = vmatpush.msra.mxu0 0.0
    %905 = vmatpush.msra.mxu0 0.0
    %906 = vmatpush.msra.mxu0 0.0
    %907 = vmatpush.msra.mxu0 0.0
    %908 = vmatpush.msra.mxu0 %v172
    %909 = vmatpush.msra.mxu0 %v171
    %910 = vmatpush.msra.mxu0 %v170
    %911 = vmatpush.msra.mxu0 %v169
    %912 = vmatpush.msra.mxu0 %v168
    %913 = vmatpush.msra.mxu0 %v167
    %914 = vmatpush.msra.mxu0 %v166
    %915 = vmatpush.msra.mxu0 %v165
    %916 = vmatmul.f32.gmra.mxu0 %v898
    %v917 = vpop.f32.mrf.mxu0
    %v918 = vadd.f32 %v184, %v917
    %919 = vdwg.mxu0
    %v921 = vsel %vm198, %v849, 0
    %923 = vmatpush.msra.mxu0 0.0
    %924 = vmatpush.msra.mxu0 0.0
    %925 = vmatpush.msra.mxu0 0.0
    %926 = vmatpush.msra.mxu0 0.0
    %927 = vmatpush.msra.mxu0 0.0
    %928 = vmatpush.msra.mxu0 0.0
    %929 = vmatpush.msra.mxu0 0.0
    %930 = vmatpush.msra.mxu0 0.0
    %931 = vmatpush.msra.mxu0 %v345
    %932 = vmatpush.msra.mxu0 %v343
    %933 = vmatpush.msra.mxu0 %v341
    %934 = vmatpush.msra.mxu0 %v339
    %935 = vmatpush.msra.mxu0 %v337
    %936 = vmatpush.msra.mxu0 %v335
    %937 = vmatpush.msra.mxu0 %v333
    %938 = vmatpush.msra.mxu0 %v331
    %939 = vmatmul.f32.gmra.mxu0 %v921
    %v940 = vpop.f32.mrf.mxu0
    %v941 = vadd.f32 0.0, %v940
    %942 = vdwg.mxu0
    %v943 = vadd.f32 %v918, %v941
    %v944 = vtanh.pop %v943
    %v945 = vld [vmem:[#allocation2 + $0x58] sm:$0xff]
    %v946 = vld [vmem:[#allocation2 + $0x60] sm:$0xff]
    %v947 = vld [vmem:[#allocation2 + $0x68] sm:$0xff]
    %v948 = vld [vmem:[#allocation2 + $0x70] sm:$0xff]
    %v949 = vld [vmem:[#allocation2 + $0x78] sm:$0xff]
    %v950 = vld [vmem:[#allocation2 + $0x80] sm:$0xff]
    %v951 = vld [vmem:[#allocation2 + $0x88] sm:$0xff]
    %v952 = vld [vmem:[#allocation2 + $0x90] sm:$0xff]
    %v953 = vld [vmem:[#allocation2 + $0x80] sm:$0x1]
    %v954 = vperm.slane %v953, 0
    %956 = vrot.lane.b32.xlu0 %v954, 64
    %v957 = vpop.permute.xlu0 %956
    %v960 = vsel %vm198, %v944, 0
    %962 = vmatpush.msra.mxu0 0.0
    %963 = vmatpush.msra.mxu0 0.0
    %964 = vmatpush.msra.mxu0 0.0
    %965 = vmatpush.msra.mxu0 0.0
    %966 = vmatpush.msra.mxu0 0.0
    %967 = vmatpush.msra.mxu0 0.0
    %968 = vmatpush.msra.mxu0 0.0
    %969 = vmatpush.msra.mxu0 0.0
    %970 = vmatpush.msra.mxu0 %v952
    %971 = vmatpush.msra.mxu0 %v951
    %972 = vmatpush.msra.mxu0 %v950
    %973 = vmatpush.msra.mxu0 %v949
    %974 = vmatpush.msra.mxu0 %v948
    %975 = vmatpush.msra.mxu0 %v947
    %976 = vmatpush.msra.mxu0 %v946
    %977 = vmatpush.msra.mxu0 %v945
    %978 = vmatmul.f32.gmra.mxu0 %v960
    %v979 = vpop.f32.mrf.mxu0
    %v980 = vadd.f32 %v957, %v979
    %981 = vdwg.mxu0
    %v982 = vmax.f32 %v980, 0.0
    %v983 = vld [vmem:[#allocation2 + $0x88] sm:$0xff]
    %v984 = vld [vmem:[#allocation2 + $0x90] sm:$0xff]
    %v985 = vld [vmem:[#allocation2 + $0x98] sm:$0xff]
    %v986 = vld [vmem:[#allocation2 + $0xa0] sm:$0xff]
    %v987 = vld [vmem:[#allocation2 + $0xa8] sm:$0xff]
    %v988 = vld [vmem:[#allocation2 + $0xb0] sm:$0xff]
    %v989 = vld [vmem:[#allocation2 + $0xb8] sm:$0xff]
    %v990 = vld [vmem:[#allocation2 + $0xc0] sm:$0xff]
    %v991 = vld [vmem:[#allocation2 + $0x98] sm:$0x1]
    %v992 = vperm.slane %v991, 0
    %1001 = vrot.lane.b32.xlu0 %v983, 64
    %v1002 = vpop.permute.xlu0 %1001
    %1003 = vrot.lane.b32.xlu0 %v984, 64
    %v1004 = vpop.permute.xlu0 %1003
    %1005 = vrot.lane.b32.xlu0 %v985, 64
    %v1006 = vpop.permute.xlu0 %1005
    %1007 = vrot.lane.b32.xlu0 %v986, 64
    %v1008 = vpop.permute.xlu0 %1007
    %1009 = vrot.lane.b32.xlu0 %v987, 64
    %v1010 = vpop.permute.xlu0 %1009
    %1011 = vrot.lane.b32.xlu0 %v988, 64
    %v1012 = vpop.permute.xlu0 %1011
    %1013 = vrot.lane.b32.xlu0 %v989, 64
    %v1014 = vpop.permute.xlu0 %1013
    %1015 = vrot.lane.b32.xlu0 %v990, 64
    %v1016 = vpop.permute.xlu0 %1015
    %v1026 = vsel %vm198, %v982, 0
    %1028 = vmatpush.msra.mxu0 0.0
    %1029 = vmatpush.msra.mxu0 0.0
    %1030 = vmatpush.msra.mxu0 0.0
    %1031 = vmatpush.msra.mxu0 0.0
    %1032 = vmatpush.msra.mxu0 0.0
    %1033 = vmatpush.msra.mxu0 0.0
    %1034 = vmatpush.msra.mxu0 0.0
    %1035 = vmatpush.msra.mxu0 0.0
    %1036 = vmatpush.msra.mxu0 %v1016
    %1037 = vmatpush.msra.mxu0 %v1014
    %1038 = vmatpush.msra.mxu0 %v1012
    %1039 = vmatpush.msra.mxu0 %v1010
    %1040 = vmatpush.msra.mxu0 %v1008
    %1041 = vmatpush.msra.mxu0 %v1006
    %1042 = vmatpush.msra.mxu0 %v1004
    %1043 = vmatpush.msra.mxu0 %v1002
    %1044 = vmatmul.f32.gmra.mxu0 %v1026
    %v1045 = vpop.f32.mrf.mxu0
    %v1046 = vadd.f32 %v992, %v1045
    %1047 = vdwg.mxu0
    %v1048 = vmax.f32 %v1046, 0.0
    %v1049 = vld [vmem:[#allocation2 + $0xa0] sm:$0xff]
    %v1050 = vld [vmem:[#allocation2 + $0xa8] sm:$0xff]
    %v1051 = vld [vmem:[#allocation2 + $0xb0] sm:$0xff]
    %v1052 = vld [vmem:[#allocation2 + $0xb8] sm:$0xff]
    %v1053 = vld [vmem:[#allocation2 + $0xc0] sm:$0xff]
    %v1054 = vld [vmem:[#allocation2 + $0xc8] sm:$0xff]
    %v1055 = vld [vmem:[#allocation2 + $0xd0] sm:$0xff]
    %v1056 = vld [vmem:[#allocation2 + $0xd8] sm:$0xff]
    %v1057 = vld [vmem:[#allocation2 + $0xc8] sm:$0x1]
    %v1058 = vperm.slane %v1057, 0
    %1060 = vrot.lane.b32.xlu0 %v1058, 64
    %v1061 = vpop.permute.xlu0 %1060
    %v1064 = vsel %vm198, %v1048, 0
    %1066 = vmatpush.msra.mxu0 0.0
    %1067 = vmatpush.msra.mxu0 0.0
    %1068 = vmatpush.msra.mxu0 0.0
    %1069 = vmatpush.msra.mxu0 0.0
    %1070 = vmatpush.msra.mxu0 0.0
    %1071 = vmatpush.msra.mxu0 0.0
    %1072 = vmatpush.msra.mxu0 0.0
    %1073 = vmatpush.msra.mxu0 0.0
    %1074 = vmatpush.msra.mxu0 %v1056
    %1075 = vmatpush.msra.mxu0 %v1055
    %1076 = vmatpush.msra.mxu0 %v1054
    %1077 = vmatpush.msra.mxu0 %v1053
    %1078 = vmatpush.msra.mxu0 %v1052
    %1079 = vmatpush.msra.mxu0 %v1051
    %1080 = vmatpush.msra.mxu0 %v1050
    %1081 = vmatpush.msra.mxu0 %v1049
    %1082 = vmatmul.f32.gmra.mxu0 %v1064
    %v1083 = vpop.f32.mrf.mxu0
    %v1084 = vadd.f32 %v1061, %v1083
    %1085 = vdwg.mxu0
    %vm1086 = vcmask 3072
    %1087 = vst.msk [vmem:[%s2] sm:$0xf] %vm1086, %v1084
    // Predicated region
    $region14: #{tpu_custom_call.1} parent=1 // pred_check
      _
    $region15: #{tpu_custom_call.1} parent=1 // pred_check_branch
      %1089 = sbr.rel (0) target = $region17
    $region16: #{tpu_custom_call.1} parent=1 // pred_region
      _
    $region17: #{tpu_custom_call.1} parent=1 // pred_fallthru
      _
    // Predicated region
    $region18: #{tpu_custom_call.1} parent=1 // pred_check
      _
    $region19: #{tpu_custom_call.1} parent=1 // pred_check_branch
      %1091 = sbr.rel (0) target = $region21
    $region20: #{tpu_custom_call.1} parent=1 // pred_region
      _
    $region21: #{tpu_custom_call.1} parent=1 // pred_fallthru
      _
    %1092 = vsyncpa [#allocation3], 1

</llo_original>
